<compile_context>
chip_gen: v5e
topology: v5e:2x2
jax: 0.10.0
libtpu: 0.0.40
codegen_flags: <defaults>
</compile_context>

<pallas_src>
import jax
import jax.numpy as jnp
from jax.experimental import pallas as pl
from jax.experimental.pallas import tpu as pltpu


def _linear_kernel(w_ref, b_ref, x_ref, o_ref):
    # w_ref: SMEM (Fin,) f32 scalars, b_ref: SMEM (1,) f32 scalar
    # x_ref: VMEM (Fin, TB) lane-dense, o_ref: VMEM (1, TB) lane-dense
    fin = x_ref.shape[0]
    # Statically unrolled 4-term FMA on the VPU; each term is one (1, TB) vreg
    # row scaled by an SMEM scalar (scalar operand rides the sreg path).
    acc = x_ref[0:1, :].astype(jnp.float32) * w_ref[0]
    for k in range(1, fin):  # Fin == 4, static unroll
        acc = acc + x_ref[k:k + 1, :].astype(jnp.float32) * w_ref[k]
    o_ref[...] = (acc + b_ref[0]).astype(o_ref.dtype)


def ml_regression_forward(x, weight, bias):
    """x: (B, 4), weight: (1, 4), bias: (1,) -> (B, 1). Same math as nn.Linear(4,1)."""
    B, Fin = x.shape
    Fout = weight.shape[0]  # 1

    # Feature-major, lane-dense layout: batch on the 128-lane axis.
    x_t = jnp.transpose(x)  # (Fin, B) -- wrapper-side layout plumbing

    # Lane-dense batch tile (multiple of 128); pad the batch to a tile multiple.
    LANE = 128
    TB_MAX = 2048
    b_pad128 = ((B + LANE - 1) // LANE) * LANE
    tb = min(b_pad128, TB_MAX)
    b_pad = ((b_pad128 + tb - 1) // tb) * tb
    if b_pad != B:
        x_t = jnp.pad(x_t, ((0, 0), (0, b_pad - B)))

    # Weight/bias: 5 floats -> SMEM scalars (no VMEM DMA, no double-buffering).
    w_flat = weight.reshape(Fin).astype(jnp.float32)
    b_flat = bias.reshape(Fout).astype(jnp.float32)

    out_t = pl.pallas_call(
        _linear_kernel,
        out_shape=jax.ShapeDtypeStruct((Fout, b_pad), x.dtype),
        grid=(b_pad // tb,),
        in_specs=[
            pl.BlockSpec(memory_space=pltpu.MemorySpace.SMEM),   # weight (Fin,)
            pl.BlockSpec(memory_space=pltpu.MemorySpace.SMEM),   # bias (1,)
            pl.BlockSpec((Fin, tb), lambda i: (0, i)),           # x (Fin, tb)
        ],
        out_specs=pl.BlockSpec((Fout, tb), lambda i: (0, i)),    # out (1, tb)
        compiler_params=pltpu.CompilerParams(
            dimension_semantics=("parallel",),
        ),
    )(w_flat, b_flat, x_t)

    # Back to the PyTorch-style (B, 1) output (drop lane padding).
    return jnp.transpose(out_t[:, :B])


if __name__ == "__main__":
    key = jax.random.PRNGKey(0)
    kx, kw, kb = jax.random.split(key, 3)

    B, Fin, Fout = 8, 4, 1

    # Deterministic synthetic parameters (same shapes as nn.Linear(4, 1)).
    x = jax.random.normal(kx, (B, Fin), dtype=jnp.float32)
    weight = jax.random.normal(kw, (Fout, Fin), dtype=jnp.float32) * 0.5
    bias = jax.random.normal(kb, (Fout,), dtype=jnp.float32) * 0.1

    out = ml_regression_forward(x, weight, bias)
    out = jax.block_until_ready(out)

    ref = x @ weight.T + bias
    assert out.shape == (B, Fout)
    assert jnp.allclose(out, ref, atol=1e-5), "mismatch vs reference (B=8)"

    # Exercise the pad + slice path with a batch that is not a lane multiple.
    B2 = 200
    x2 = jax.random.normal(jax.random.PRNGKey(1), (B2, Fin), dtype=jnp.float32)
    out2 = jax.block_until_ready(ml_regression_forward(x2, weight, bias))
    ref2 = x2 @ weight.T + bias
    assert out2.shape == (B2, Fout)
    assert jnp.allclose(out2, ref2, atol=1e-5), "mismatch vs reference (B=200)"

    # Exercise the multi-tile grid path (batch > one lane tile).
    B3 = 4096 + 64
    x3 = jax.random.normal(jax.random.PRNGKey(2), (B3, Fin), dtype=jnp.float32)
    out3 = jax.block_until_ready(ml_regression_forward(x3, weight, bias))
    ref3 = x3 @ weight.T + bias
    assert out3.shape == (B3, Fout)
    assert jnp.allclose(out3, ref3, atol=1e-5), "mismatch vs reference (B=4160)"

    print("KERNEL_OK")
</pallas_src>

<mosaic_0001>
module attributes {stable_mosaic.version = 11 : i64} {
  func.func @_linear_kernel(%arg0: i32, %arg1: memref<4xf32, #tpu.memory_space<smem>>, %arg2: memref<1xf32, #tpu.memory_space<smem>>, %arg3: memref<4x128xf32, #tpu.memory_space<vmem>>, %arg4: memref<1x128xf32, #tpu.memory_space<vmem>>) attributes {dimension_semantics = [#tpu.dimension_semantics<parallel>], iteration_bounds = array<i64: 1>, scalar_prefetch = 0 : i64, scratch_operands = 0 : i64, tpu.core_type = #tpu.core_type<tc>, window_params = [{transform_indices = @transform_0, window_bounds = array<i64: 4>}, {transform_indices = @transform_1, window_bounds = array<i64: 1>}, {transform_indices = @transform_2, window_bounds = array<i64: 4, 128>}, {transform_indices = @transform_3, window_bounds = array<i64: 1, 128>}]} {
    %c0 = arith.constant 0 : index
    %c0_0 = arith.constant 0 : index
    %0 = vector.load %arg3[%c0, %c0_0] : memref<4x128xf32, #tpu.memory_space<vmem>>, vector<1x128xf32>
    %c0_1 = arith.constant 0 : index
    %1 = memref.load %arg1[%c0_1] : memref<4xf32, #tpu.memory_space<smem>>
    %2 = vector.broadcast %1 : f32 to vector<1x128xf32>
    %3 = arith.mulf %0, %2 : vector<1x128xf32>
    %c1 = arith.constant 1 : index
    %c0_2 = arith.constant 0 : index
    %4 = vector.load %arg3[%c1, %c0_2] : memref<4x128xf32, #tpu.memory_space<vmem>>, vector<1x128xf32>
    %c1_3 = arith.constant 1 : index
    %5 = memref.load %arg1[%c1_3] : memref<4xf32, #tpu.memory_space<smem>>
    %6 = vector.broadcast %5 : f32 to vector<1x128xf32>
    %7 = arith.mulf %4, %6 : vector<1x128xf32>
    %8 = arith.addf %3, %7 : vector<1x128xf32>
    %c2 = arith.constant 2 : index
    %c0_4 = arith.constant 0 : index
    %9 = vector.load %arg3[%c2, %c0_4] : memref<4x128xf32, #tpu.memory_space<vmem>>, vector<1x128xf32>
    %c2_5 = arith.constant 2 : index
    %10 = memref.load %arg1[%c2_5] : memref<4xf32, #tpu.memory_space<smem>>
    %11 = vector.broadcast %10 : f32 to vector<1x128xf32>
    %12 = arith.mulf %9, %11 : vector<1x128xf32>
    %13 = arith.addf %8, %12 : vector<1x128xf32>
    %c3 = arith.constant 3 : index
    %c0_6 = arith.constant 0 : index
    %14 = vector.load %arg3[%c3, %c0_6] : memref<4x128xf32, #tpu.memory_space<vmem>>, vector<1x128xf32>
    %c3_7 = arith.constant 3 : index
    %15 = memref.load %arg1[%c3_7] : memref<4xf32, #tpu.memory_space<smem>>
    %16 = vector.broadcast %15 : f32 to vector<1x128xf32>
    %17 = arith.mulf %14, %16 : vector<1x128xf32>
    %18 = arith.addf %13, %17 : vector<1x128xf32>
    %c0_8 = arith.constant 0 : index
    %19 = memref.load %arg2[%c0_8] : memref<1xf32, #tpu.memory_space<smem>>
    %20 = vector.broadcast %19 : f32 to vector<1x128xf32>
    %21 = arith.addf %18, %20 : vector<1x128xf32>
    %c0_9 = arith.constant 0 : index
    %c0_10 = arith.constant 0 : index
    %22 = vector.load %arg4[%c0_9, %c0_10] : memref<1x128xf32, #tpu.memory_space<vmem>>, vector<1x128xf32>
    tpu.vector_store %arg4[%c0_9, %c0_10], %21 {strides = array<i32>} : memref<1x128xf32, #tpu.memory_space<vmem>>, vector<1x128xf32>,
    return
  }
  func.func @transform_0(%arg0: i32) -> i32 {
    %c0_i32 = arith.constant 0 : i32
    %c0_i32_0 = arith.constant 0 : i32
    return %c0_i32 : i32
  }
  func.func @transform_1(%arg0: i32) -> i32 {
    %c0_i32 = arith.constant 0 : i32
    %c0_i32_0 = arith.constant 0 : i32
    return %c0_i32 : i32
  }
  func.func @transform_2(%arg0: i32) -> (i32, i32) {
    %c0_i32 = arith.constant 0 : i32
    %c0_i32_0 = arith.constant 0 : i32
    return %c0_i32, %arg0 : i32, i32
  }
  func.func @transform_3(%arg0: i32) -> (i32, i32) {
    %c0_i32 = arith.constant 0 : i32
    %c0_i32_0 = arith.constant 0 : i32
    return %c0_i32, %arg0 : i32, i32
  }
}

</mosaic_0001>

<llo_original>
// kernel: tpu_custom_call.1
$region0: #{tpu_custom_call.1}
  #allocation0 [shape = 'u32[]', space=smem, size = 0x4, offset = 0x4, fixed_abs, tag = 'smem constant byte address 0x4 - core index']
  #allocation1 [shape = 'u32[72,128]{1,0:T(1,128)}', space=vmem, size = 0x9000, scoped, tag = 'internal scratch']
  #allocation2 [shape = 'f32[1]{0:T(128)S(6)}', space=smem, size = 0x200, scoped, tag = 'scoped memory for tpu_custom_call.1']
  %s0 = inlined_call_operand.vmem [shape: f32[4], index: 0, kind: input, shape index: {}]
  %s1 = inlined_call_operand.<no memory space> [shape: f32[1], index: 1, kind: input, shape index: {}]
  %s2 = inlined_call_operand.hbm [shape: f32[4,128], index: 2, kind: input, shape index: {}]
  %s3 = inlined_call_operand.hbm [shape: f32[1,128], index: 3, kind: output, shape index: {}]
  %s4 = sld [smem:[#allocation0]]
  $region30: #{tpu_custom_call.1} parent=0
    _
  %s6 = ssub.s32 1, %s4
  %s7 = scalar_select 0, %s6, %s4
  %8 = sst [smem:[#allocation2]] %s1
  $region1: #{tpu_custom_call.1} parent=0
    #allocation3 [shape = 'u8[512]{0}', space=smem, size = 0x200, scoped, tag = 'input window, operand 0, single buffered']
    #allocation4 [shape = 's32[1]{0}', space=sflag, size = 0x4, scoped, tag = 'scoped memory for tpu_custom_call.1']
    #allocation5 [shape = 's32[1]{0}', space=sflag, size = 0x4, scoped, tag = 'scoped memory for tpu_custom_call.1']
    #allocation6 [shape = 's32[1]{0}', space=sflag, size = 0x4, scoped, tag = 'scoped memory for tpu_custom_call.1']
    #allocation7 [shape = 'u8[2048]{0}', space=vmem, size = 0x800, scoped, tag = 'input window, operand 2, single buffered']
    #allocation8 [shape = 'u8[512]{0}', space=vmem, size = 0x400, scoped, tag = 'output window, operand 0, single buffered']
    %9 = vsyncpa [#allocation6], 0
    %10 = vsyncpa [#allocation4], 0
    %11 = vsyncpa [#allocation5], 0
    // Predicated region
    $region2: #{tpu_custom_call.1} parent=1 // pred_check
      _
    $region3: #{tpu_custom_call.1} parent=1 // pred_check_branch
      %13 = sbr.rel (0) target = $region5
    $region4: #{tpu_custom_call.1} parent=1 // pred_region
      %15 = vsyncadd [#allocation6], 0
      %s17 = sshll.u32 %s0, 4
      %s18 = int_to_ptr.vmem [resolvable:$true] %s17
      %20 = dma.vmem_to_smem %s18, 16, [#allocation3], [#allocation6]
    $region5: #{tpu_custom_call.1} parent=1 // pred_fallthru
      _
    // Predicated region
    $region6: #{tpu_custom_call.1} parent=1 // pred_check
      _
    $region7: #{tpu_custom_call.1} parent=1 // pred_check_branch
      %22 = sbr.rel (0) target = $region9
    $region8: #{tpu_custom_call.1} parent=1 // pred_region
      _
    $region9: #{tpu_custom_call.1} parent=1 // pred_fallthru
      _
    // Predicated region
    $region10: #{tpu_custom_call.1} parent=1 // pred_check
      _
    $region11: #{tpu_custom_call.1} parent=1 // pred_check_branch
      %24 = sbr.rel (0) target = $region13
    $region12: #{tpu_custom_call.1} parent=1 // pred_region
      %26 = vsyncadd [#allocation4], 0
      %s28 = sshll.u32 %s2, 4
      %s29 = int_to_ptr.hbm [resolvable:$true] %s28
      %s30 = sshll.u32 [#allocation7], 4
      %s31 = int_to_ptr.vmem [resolvable:$true] %s30
      %33 = dma.hbm_to_vmem [thread:$0]  %s29, 64, %s31, [#allocation4]
    $region13: #{tpu_custom_call.1} parent=1 // pred_fallthru
      _
    // Predicated region
    $region14: #{tpu_custom_call.1} parent=1 // pred_check
      _
    $region15: #{tpu_custom_call.1} parent=1 // pred_check_branch
      %35 = sbr.rel (0) target = $region17
    $region16: #{tpu_custom_call.1} parent=1 // pred_region
      %37 = dma.done [#allocation6], 16
    $region17: #{tpu_custom_call.1} parent=1 // pred_fallthru
      _
    // Predicated region
    $region18: #{tpu_custom_call.1} parent=1 // pred_check
      _
    $region19: #{tpu_custom_call.1} parent=1 // pred_check_branch
      %39 = sbr.rel (0) target = $region21
    $region20: #{tpu_custom_call.1} parent=1 // pred_region
      %41 = dma.done [#allocation4], 64
    $region21: #{tpu_custom_call.1} parent=1 // pred_fallthru
      _
    %42 = sfence
    %v43 = vld [vmem:[#allocation7] sm:$0x1]
    %s44 = sld [smem:[#allocation3]]
    %v45 = vstv %s44
    %v46 = vmul.f32 %v43, %v45
    %v47 = vld [vmem:[#allocation7 + $0x1] sm:$0x1]
    %s48 = sld [smem:[#allocation3 + $0x1]]
    %v49 = vstv %s48
    %v50 = vmul.f32 %v47, %v49
    %v51 = vadd.f32 %v46, %v50
    %v52 = vld [vmem:[#allocation7 + $0x2] sm:$0x1]
    %s53 = sld [smem:[#allocation3 + $0x2]]
    %v54 = vstv %s53
    %v55 = vmul.f32 %v52, %v54
    %v56 = vadd.f32 %v51, %v55
    %v57 = vld [vmem:[#allocation7 + $0x3] sm:$0x1]
    %s58 = sld [smem:[#allocation3 + $0x3]]
    %v59 = vstv %s58
    %v60 = vmul.f32 %v57, %v59
    %v61 = vadd.f32 %v56, %v60
    %s62 = sld [smem:[#allocation2]]
    %v63 = vstv %s62
    %v64 = vadd.f32 %v61, %v63
    %65 = vst [vmem:[#allocation8] sm:$0x1] %v64
    // Predicated region
    $region22: #{tpu_custom_call.1} parent=1 // pred_check
      _
    $region23: #{tpu_custom_call.1} parent=1 // pred_check_branch
      %67 = sbr.rel (0) target = $region25
    $region24: #{tpu_custom_call.1} parent=1 // pred_region
      %69 = vsyncadd [#allocation5], 0
      %s71 = sshll.u32 [#allocation8], 4
      %s72 = int_to_ptr.vmem [resolvable:$true] %s71
      %s73 = sshll.u32 %s3, 4
      %s74 = int_to_ptr.hbm [resolvable:$true] %s73
      %76 = dma.vmem_to_hbm [thread:$0]  %s72, 16, %s74, [#allocation5]
    $region25: #{tpu_custom_call.1} parent=1 // pred_fallthru
      _
    // Predicated region
    $region26: #{tpu_custom_call.1} parent=1 // pred_check
      _
    $region27: #{tpu_custom_call.1} parent=1 // pred_check_branch
      %78 = sbr.rel (0) target = $region29
    $region28: #{tpu_custom_call.1} parent=1 // pred_region
      %80 = dma.done [#allocation5], 16
    $region29: #{tpu_custom_call.1} parent=1 // pred_fallthru
      _
    %81 = vsyncpa [#allocation4], 1
    %82 = vsyncpa [#allocation5], 1
    %83 = vsyncpa [#allocation6], 1

</llo_original>
